<compile_context>
chip_gen: v7x
topology: tpu7x:2x2x1
jax: 0.10.0
libtpu: 0.0.40
codegen_flags: <defaults>
</compile_context>

<pallas_src>
import functools

import numpy as np
import jax
import jax.numpy as jnp
from jax.experimental import pallas as pl
from jax.experimental.pallas import tpu as pltpu

CP = 128        # padded channel width (lane-dense for all hidden layers)
K = 3           # conv kernel size
STRIDE = 2
PAD = 1


def fused_forward_kernel(xp_ref, wcat_ref, b1_ref, wstack_ref, bstack_ref,
                         wq_ref, lmask_ref, o_ref, *, batch, n_out, n_stage):
    """Entire CustomModel forward for a small batch, fully resident in VMEM."""
    cp = b1_ref.shape[-1]

    # ---- fc1: Conv1d(k=3, s=2, p=1) ----
    # Gather the 3 filter-tap operands directly at the stride-2 output positions
    # (strided sublane loads), concatenate along the contraction axis and issue a
    # single (B*n_out, 3*CP) @ (3*CP, CP) MXU dot.
    taps = [xp_ref[:, pl.ds(k, n_out, stride=2), :] for k in range(K)]
    lhs = jnp.concatenate(taps, axis=-1).reshape(batch * n_out, K * cp)
    y = jnp.dot(lhs.astype(jnp.bfloat16), wcat_ref[...],
                preferred_element_type=jnp.float32)              # (B*n_out, CP)
    y = y.reshape(batch, n_out, cp)

    # AdaptiveMaxPool1d(1) over the conv output positions; bias hoisted past the
    # max (valid since the bias is constant per channel), then ReLU.
    h = jnp.maximum(jnp.max(y, axis=1) + b1_ref[...], 0.0)       # (B, CP)

    # ---- stage_1 .. stage_3_1: length-1 input => only the middle tap touches
    #      real data, and pool(1) of a length-1 sequence is the identity ----
    for i in range(n_stage):
        z = jnp.dot(h.astype(jnp.bfloat16), wstack_ref[i],
                    preferred_element_type=jnp.float32) + bstack_ref[i]
        h = jnp.maximum(z, 0.0)

    # ---- CustomBlock classifier (weights pre-quantized in prepare_params) ----
    # Lane-dense logits; padded lanes get -1e30 so they contribute exp(~-inf)=0
    # to the softmax denominator.
    logits = jnp.dot(h.astype(jnp.bfloat16), wq_ref[...],
                     preferred_element_type=jnp.float32) + lmask_ref[...]
    m = jnp.max(logits, axis=-1, keepdims=True)
    e = jnp.exp(logits - m)
    o_ref[...] = e / jnp.sum(e, axis=-1, keepdims=True)          # (B, CP), lane-dense


def prepare_params(params):
    """One-time weight preprocessing: transposes, lane padding to 128, tap/stage
    weight concatenation/stacking and the CustomBlock quantization (all depend only
    on the weights, hoisted off the per-forward path)."""
    conv_ws, conv_bs, wc = params["conv_w"], params["conv_b"], params["classifier_w"]

    # fc1 per-tap weights transposed to (Cin, Cout), zero-padded to (CP, CP) and
    # concatenated along the contraction axis -> single (K*CP, CP) bf16 MXU operand.
    w1 = conv_ws[0]                                        # (Cout1, Cin, K)
    cout1, cin, k = w1.shape
    assert k == K and cin <= CP and cout1 <= CP
    taps = [jnp.pad(jnp.transpose(w1[:, :, t]), ((0, CP - cin), (0, CP - cout1)))
            for t in range(K)]
    wcat = jnp.concatenate(taps, axis=0).astype(jnp.bfloat16)      # (K*CP, CP)
    b1 = jnp.pad(conv_bs[0], (0, CP - cout1)).reshape(1, CP).astype(jnp.float32)

    # stage_* layers: middle tap only (valid because every stage input has length 1),
    # pre-transposed to (Cin, Cout), zero-padded to (CP, CP), stacked into one array.
    ws, bs = [], []
    for w, b in zip(conv_ws[1:], conv_bs[1:]):
        assert w.shape[2] == K
        wm = jnp.transpose(w[:, :, K // 2])                # (Cin, Cout)
        ci, co = wm.shape
        ws.append(jnp.pad(wm, ((0, CP - ci), (0, CP - co))))
        bs.append(jnp.pad(b, (0, CP - co)))
    wstack = jnp.stack(ws).astype(jnp.bfloat16)            # (n_stage, CP, CP)
    bstack = jnp.stack(bs).reshape(len(bs), 1, CP).astype(jnp.float32)

    # CustomBlock: step = max|W|/half_lvls; Wq = round(hardtanh(W)/step) * step.
    # Padded to a lane-dense (CP, CP) operand; the additive mask kills padded lanes
    # before the softmax.
    half_lvls = 127.0                                      # (2**8 - 2) / 2
    step = jnp.max(jnp.abs(wc)) / half_lvls
    wq = jnp.round(jnp.clip(wc, -half_lvls * step, half_lvls * step) / step) * step
    out_dim, hid = wq.shape
    wq_t = jnp.pad(jnp.transpose(wq),
                   ((0, CP - hid), (0, CP - out_dim))).astype(jnp.bfloat16)
    lmask = jnp.where(jnp.arange(CP) < out_dim, 0.0, -1e30)
    lmask = lmask.reshape(1, CP).astype(jnp.float32)

    return {"wcat": wcat, "b1": b1, "wstack": wstack, "bstack": bstack,
            "wq_t": wq_t, "lmask": lmask}


def custom_model_forward(x, prepped, *, out_dim=5):
    """Fused CustomModel forward.  x: (B, Cin, L) float32, PyTorch NCL layout."""
    B, Cin, L = x.shape
    n_out = (L + 2 * PAD - K) // STRIDE + 1          # stride-2 conv output length
    n_stage = prepped["wstack"].shape[0]

    # Only XLA-side glue (one fused tiny op): NCL -> NLC transpose + zero pad of
    # the length (+PAD each side) and the channels (Cin -> 128 lanes).
    x_t = jnp.transpose(x, (0, 2, 1))
    xp = jnp.pad(x_t, ((0, 0), (PAD, PAD), (0, CP - Cin)))

    kernel = functools.partial(fused_forward_kernel, batch=B, n_out=n_out,
                               n_stage=n_stage)
    # Grid-less single invocation: the whole problem is a few hundred KiB of VMEM.
    # (If batch ever grows, add a leading "parallel" batch grid axis so v7x's two
    # TensorCores split it.)
    # TODO(synk): nn.Dropout(p=0.2) is identity at inference (eval mode); training-
    # mode RNG masking is not implemented.
    out_padded = pl.pallas_call(
        kernel,
        out_shape=jax.ShapeDtypeStruct((B, CP), jnp.float32),
        in_specs=[pl.BlockSpec(memory_space=pltpu.MemorySpace.VMEM)] * 7,
        out_specs=pl.BlockSpec(memory_space=pltpu.MemorySpace.VMEM),
    )(xp, prepped["wcat"], prepped["b1"], prepped["wstack"],
      prepped["bstack"], prepped["wq_t"], prepped["lmask"])
    return out_padded[:, :out_dim]


def reference_forward(x, params):
    """Pure-JAX reference replicating the PyTorch forward (eval mode)."""
    h = x
    for w, b in zip(params["conv_w"], params["conv_b"]):
        y = jax.lax.conv_general_dilated(
            h, w, window_strides=(STRIDE,), padding=((PAD, PAD),),
            dimension_numbers=("NCH", "OIH", "NCH"),
            precision=jax.lax.Precision.HIGHEST)
        y = y + b[None, :, None]
        h = jax.nn.relu(jnp.max(y, axis=-1, keepdims=True))   # relu(AdaptiveMaxPool1d(1))
    h = h.reshape(h.shape[0], -1)
    wc = params["classifier_w"]
    half = 127.0
    step = jnp.max(jnp.abs(wc)) / half
    wq = jnp.round(jnp.clip(wc, -half * step, half * step) / step) * step
    logits = jnp.dot(h, wq.T, precision=jax.lax.Precision.HIGHEST)
    return jax.nn.softmax(logits, axis=-1)


def init_params(key):
    # (out_channels, in_channels, kernel) for fc1, stage_1, stage_1_1, stage_2,
    # stage_2_1, stage_3, stage_3_1 (defaults of CustomModel.__init__)
    dims = [(32, 69, 3), (64, 32, 3), (64, 64, 3), (128, 64, 3),
            (128, 128, 3), (100, 128, 3), (100, 100, 3)]
    conv_w, conv_b = [], []
    for (co, ci, k) in dims:
        key, kw, kb = jax.random.split(key, 3)
        bound = 1.0 / float(np.sqrt(ci * k))
        conv_w.append(jax.random.uniform(kw, (co, ci, k), jnp.float32, -bound, bound))
        conv_b.append(jax.random.uniform(kb, (co,), jnp.float32, -bound, bound))
    key, kc = jax.random.split(key)
    bound = 1.0 / float(np.sqrt(100.0))                  # kaiming_uniform_(a=sqrt(5))
    wc = jax.random.uniform(kc, (5, 100), jnp.float32, -bound, bound)
    return {"conv_w": conv_w, "conv_b": conv_b, "classifier_w": wc}


if __name__ == "__main__":
    key = jax.random.PRNGKey(0)
    kp, kx = jax.random.split(key)
    params = init_params(kp)
    # x: (batch=2, channels=input_size=69, length=16), PyTorch NCL layout
    x = jax.random.normal(kx, (2, 69, 16), jnp.float32)

    prepped = prepare_params(params)                     # one-time weight prep
    fwd = jax.jit(lambda xx, pp: custom_model_forward(xx, pp, out_dim=5))
    out = jax.block_until_ready(fwd(x, prepped))

    ref = reference_forward(x, params)
    assert out.shape == (2, 5), out.shape
    np.testing.assert_allclose(np.asarray(out), np.asarray(ref), atol=2e-2, rtol=2e-2)
    print("KERNEL_OK")
</pallas_src>

<mosaic_0001>
module attributes {stable_mosaic.version = 11 : i64} {
  func.func @fused_forward_kernel(%arg0: memref<2x18x128xf32, #tpu.memory_space<vmem>>, %arg1: memref<384x128xbf16, #tpu.memory_space<vmem>>, %arg2: memref<1x128xf32, #tpu.memory_space<vmem>>, %arg3: memref<6x128x128xbf16, #tpu.memory_space<vmem>>, %arg4: memref<6x1x128xf32, #tpu.memory_space<vmem>>, %arg5: memref<128x128xbf16, #tpu.memory_space<vmem>>, %arg6: memref<1x128xf32, #tpu.memory_space<vmem>>, %arg7: memref<2x128xf32, #tpu.memory_space<vmem>>) attributes {dimension_semantics = [], scalar_prefetch = 0 : i64, scratch_operands = 0 : i64, tpu.core_type = #tpu.core_type<tc>} {
    %c0 = arith.constant 0 : index
    %c0_0 = arith.constant 0 : index
    %c0_1 = arith.constant 0 : index
    %0 = tpu.strided_load %arg0[%c0, %c0_0, %c0_1] {strides = array<i32: 1, 2, 1>} : memref<2x18x128xf32, #tpu.memory_space<vmem>>, vector<2x8x128xf32>
    %c0_2 = arith.constant 0 : index
    %c1 = arith.constant 1 : index
    %c0_3 = arith.constant 0 : index
    %1 = tpu.strided_load %arg0[%c0_2, %c1, %c0_3] {strides = array<i32: 1, 2, 1>} : memref<2x18x128xf32, #tpu.memory_space<vmem>>, vector<2x8x128xf32>
    %c0_4 = arith.constant 0 : index
    %c2 = arith.constant 2 : index
    %c0_5 = arith.constant 0 : index
    %2 = tpu.strided_load %arg0[%c0_4, %c2, %c0_5] {strides = array<i32: 1, 2, 1>} : memref<2x18x128xf32, #tpu.memory_space<vmem>>, vector<2x8x128xf32>
    %3 = tpu.concatenate %0, %1, %2 in 2 : vector<2x8x128xf32>, vector<2x8x128xf32>, vector<2x8x128xf32> -> vector<2x8x384xf32>
    %4 = vector.shape_cast %3 : vector<2x8x384xf32> to vector<16x384xf32>
    %5 = arith.truncf %4 : vector<16x384xf32> to vector<16x384xbf16>
    %c0_6 = arith.constant 0 : index
    %c0_7 = arith.constant 0 : index
    %6 = vector.load %arg1[%c0_6, %c0_7] : memref<384x128xbf16, #tpu.memory_space<vmem>>, vector<384x128xbf16>
    %cst = arith.constant dense<0.000000e+00> : vector<16x128xf32>
    %7 = tpu.matmul %5, %6, %cst {dimension_numbers = #tpu.dot_dimension_numbers<[1], [0], [0], [1], [0, 0, 1, 1], [], []>} : vector<16x384xbf16>, vector<384x128xbf16>, vector<16x128xf32> -> vector<16x128xf32>
    %8 = vector.shape_cast %7 : vector<16x128xf32> to vector<2x8x128xf32>
    %cst_8 = arith.constant dense<0xFF800000> : vector<2x128xf32>
    %9 = vector.multi_reduction <maximumf>, %8, %cst_8 [1] : vector<2x8x128xf32> to vector<2x128xf32>
    %c0_9 = arith.constant 0 : index
    %c0_10 = arith.constant 0 : index
    %10 = vector.load %arg2[%c0_9, %c0_10] : memref<1x128xf32, #tpu.memory_space<vmem>>, vector<1x128xf32>
    %11 = vector.broadcast %10 : vector<1x128xf32> to vector<2x128xf32>
    %12 = arith.addf %9, %11 : vector<2x128xf32>
    %cst_11 = arith.constant 0.000000e+00 : f32
    %13 = vector.broadcast %cst_11 : f32 to vector<2x128xf32>
    %14 = arith.maximumf %12, %13 : vector<2x128xf32>
    %15 = arith.truncf %14 : vector<2x128xf32> to vector<2x128xbf16>
    %c0_12 = arith.constant 0 : index
    %c0_13 = arith.constant 0 : index
    %c0_14 = arith.constant 0 : index
    %16 = vector.load %arg3[%c0_12, %c0_13, %c0_14] : memref<6x128x128xbf16, #tpu.memory_space<vmem>>, vector<1x128x128xbf16>
    %17 = vector.shape_cast %16 : vector<1x128x128xbf16> to vector<128x128xbf16>
    %cst_15 = arith.constant dense<0.000000e+00> : vector<2x128xf32>
    %18 = tpu.matmul %15, %17, %cst_15 {dimension_numbers = #tpu.dot_dimension_numbers<[1], [0], [0], [1], [0, 0, 1, 1], [], []>} : vector<2x128xbf16>, vector<128x128xbf16>, vector<2x128xf32> -> vector<2x128xf32>
    %c0_16 = arith.constant 0 : index
    %c0_17 = arith.constant 0 : index
    %c0_18 = arith.constant 0 : index
    %19 = vector.load %arg4[%c0_16, %c0_17, %c0_18] : memref<6x1x128xf32, #tpu.memory_space<vmem>>, vector<1x1x128xf32>
    %20 = vector.shape_cast %19 : vector<1x1x128xf32> to vector<1x128xf32>
    %21 = vector.broadcast %20 : vector<1x128xf32> to vector<2x128xf32>
    %22 = arith.addf %18, %21 : vector<2x128xf32>
    %cst_19 = arith.constant 0.000000e+00 : f32
    %23 = vector.broadcast %cst_19 : f32 to vector<2x128xf32>
    %24 = arith.maximumf %22, %23 : vector<2x128xf32>
    %25 = arith.truncf %24 : vector<2x128xf32> to vector<2x128xbf16>
    %c1_20 = arith.constant 1 : index
    %c0_21 = arith.constant 0 : index
    %c0_22 = arith.constant 0 : index
    %26 = vector.load %arg3[%c1_20, %c0_21, %c0_22] : memref<6x128x128xbf16, #tpu.memory_space<vmem>>, vector<1x128x128xbf16>
    %27 = vector.shape_cast %26 : vector<1x128x128xbf16> to vector<128x128xbf16>
    %cst_23 = arith.constant dense<0.000000e+00> : vector<2x128xf32>
    %28 = tpu.matmul %25, %27, %cst_23 {dimension_numbers = #tpu.dot_dimension_numbers<[1], [0], [0], [1], [0, 0, 1, 1], [], []>} : vector<2x128xbf16>, vector<128x128xbf16>, vector<2x128xf32> -> vector<2x128xf32>
    %c1_24 = arith.constant 1 : index
    %c0_25 = arith.constant 0 : index
    %c0_26 = arith.constant 0 : index
    %29 = vector.load %arg4[%c1_24, %c0_25, %c0_26] : memref<6x1x128xf32, #tpu.memory_space<vmem>>, vector<1x1x128xf32>
    %30 = vector.shape_cast %29 : vector<1x1x128xf32> to vector<1x128xf32>
    %31 = vector.broadcast %30 : vector<1x128xf32> to vector<2x128xf32>
    %32 = arith.addf %28, %31 : vector<2x128xf32>
    %cst_27 = arith.constant 0.000000e+00 : f32
    %33 = vector.broadcast %cst_27 : f32 to vector<2x128xf32>
    %34 = arith.maximumf %32, %33 : vector<2x128xf32>
    %35 = arith.truncf %34 : vector<2x128xf32> to vector<2x128xbf16>
    %c2_28 = arith.constant 2 : index
    %c0_29 = arith.constant 0 : index
    %c0_30 = arith.constant 0 : index
    %36 = vector.load %arg3[%c2_28, %c0_29, %c0_30] : memref<6x128x128xbf16, #tpu.memory_space<vmem>>, vector<1x128x128xbf16>
    %37 = vector.shape_cast %36 : vector<1x128x128xbf16> to vector<128x128xbf16>
    %cst_31 = arith.constant dense<0.000000e+00> : vector<2x128xf32>
    %38 = tpu.matmul %35, %37, %cst_31 {dimension_numbers = #tpu.dot_dimension_numbers<[1], [0], [0], [1], [0, 0, 1, 1], [], []>} : vector<2x128xbf16>, vector<128x128xbf16>, vector<2x128xf32> -> vector<2x128xf32>
    %c2_32 = arith.constant 2 : index
    %c0_33 = arith.constant 0 : index
    %c0_34 = arith.constant 0 : index
    %39 = vector.load %arg4[%c2_32, %c0_33, %c0_34] : memref<6x1x128xf32, #tpu.memory_space<vmem>>, vector<1x1x128xf32>
    %40 = vector.shape_cast %39 : vector<1x1x128xf32> to vector<1x128xf32>
    %41 = vector.broadcast %40 : vector<1x128xf32> to vector<2x128xf32>
    %42 = arith.addf %38, %41 : vector<2x128xf32>
    %cst_35 = arith.constant 0.000000e+00 : f32
    %43 = vector.broadcast %cst_35 : f32 to vector<2x128xf32>
    %44 = arith.maximumf %42, %43 : vector<2x128xf32>
    %45 = arith.truncf %44 : vector<2x128xf32> to vector<2x128xbf16>
    %c3 = arith.constant 3 : index
    %c0_36 = arith.constant 0 : index
    %c0_37 = arith.constant 0 : index
    %46 = vector.load %arg3[%c3, %c0_36, %c0_37] : memref<6x128x128xbf16, #tpu.memory_space<vmem>>, vector<1x128x128xbf16>
    %47 = vector.shape_cast %46 : vector<1x128x128xbf16> to vector<128x128xbf16>
    %cst_38 = arith.constant dense<0.000000e+00> : vector<2x128xf32>
    %48 = tpu.matmul %45, %47, %cst_38 {dimension_numbers = #tpu.dot_dimension_numbers<[1], [0], [0], [1], [0, 0, 1, 1], [], []>} : vector<2x128xbf16>, vector<128x128xbf16>, vector<2x128xf32> -> vector<2x128xf32>
    %c3_39 = arith.constant 3 : index
    %c0_40 = arith.constant 0 : index
    %c0_41 = arith.constant 0 : index
    %49 = vector.load %arg4[%c3_39, %c0_40, %c0_41] : memref<6x1x128xf32, #tpu.memory_space<vmem>>, vector<1x1x128xf32>
    %50 = vector.shape_cast %49 : vector<1x1x128xf32> to vector<1x128xf32>
    %51 = vector.broadcast %50 : vector<1x128xf32> to vector<2x128xf32>
    %52 = arith.addf %48, %51 : vector<2x128xf32>
    %cst_42 = arith.constant 0.000000e+00 : f32
    %53 = vector.broadcast %cst_42 : f32 to vector<2x128xf32>
    %54 = arith.maximumf %52, %53 : vector<2x128xf32>
    %55 = arith.truncf %54 : vector<2x128xf32> to vector<2x128xbf16>
    %c4 = arith.constant 4 : index
    %c0_43 = arith.constant 0 : index
    %c0_44 = arith.constant 0 : index
    %56 = vector.load %arg3[%c4, %c0_43, %c0_44] : memref<6x128x128xbf16, #tpu.memory_space<vmem>>, vector<1x128x128xbf16>
    %57 = vector.shape_cast %56 : vector<1x128x128xbf16> to vector<128x128xbf16>
    %cst_45 = arith.constant dense<0.000000e+00> : vector<2x128xf32>
    %58 = tpu.matmul %55, %57, %cst_45 {dimension_numbers = #tpu.dot_dimension_numbers<[1], [0], [0], [1], [0, 0, 1, 1], [], []>} : vector<2x128xbf16>, vector<128x128xbf16>, vector<2x128xf32> -> vector<2x128xf32>
    %c4_46 = arith.constant 4 : index
    %c0_47 = arith.constant 0 : index
    %c0_48 = arith.constant 0 : index
    %59 = vector.load %arg4[%c4_46, %c0_47, %c0_48] : memref<6x1x128xf32, #tpu.memory_space<vmem>>, vector<1x1x128xf32>
    %60 = vector.shape_cast %59 : vector<1x1x128xf32> to vector<1x128xf32>
    %61 = vector.broadcast %60 : vector<1x128xf32> to vector<2x128xf32>
    %62 = arith.addf %58, %61 : vector<2x128xf32>
    %cst_49 = arith.constant 0.000000e+00 : f32
    %63 = vector.broadcast %cst_49 : f32 to vector<2x128xf32>
    %64 = arith.maximumf %62, %63 : vector<2x128xf32>
    %65 = arith.truncf %64 : vector<2x128xf32> to vector<2x128xbf16>
    %c5 = arith.constant 5 : index
    %c0_50 = arith.constant 0 : index
    %c0_51 = arith.constant 0 : index
    %66 = vector.load %arg3[%c5, %c0_50, %c0_51] : memref<6x128x128xbf16, #tpu.memory_space<vmem>>, vector<1x128x128xbf16>
    %67 = vector.shape_cast %66 : vector<1x128x128xbf16> to vector<128x128xbf16>
    %cst_52 = arith.constant dense<0.000000e+00> : vector<2x128xf32>
    %68 = tpu.matmul %65, %67, %cst_52 {dimension_numbers = #tpu.dot_dimension_numbers<[1], [0], [0], [1], [0, 0, 1, 1], [], []>} : vector<2x128xbf16>, vector<128x128xbf16>, vector<2x128xf32> -> vector<2x128xf32>
    %c5_53 = arith.constant 5 : index
    %c0_54 = arith.constant 0 : index
    %c0_55 = arith.constant 0 : index
    %69 = vector.load %arg4[%c5_53, %c0_54, %c0_55] : memref<6x1x128xf32, #tpu.memory_space<vmem>>, vector<1x1x128xf32>
    %70 = vector.shape_cast %69 : vector<1x1x128xf32> to vector<1x128xf32>
    %71 = vector.broadcast %70 : vector<1x128xf32> to vector<2x128xf32>
    %72 = arith.addf %68, %71 : vector<2x128xf32>
    %cst_56 = arith.constant 0.000000e+00 : f32
    %73 = vector.broadcast %cst_56 : f32 to vector<2x128xf32>
    %74 = arith.maximumf %72, %73 : vector<2x128xf32>
    %75 = arith.truncf %74 : vector<2x128xf32> to vector<2x128xbf16>
    %c0_57 = arith.constant 0 : index
    %c0_58 = arith.constant 0 : index
    %76 = vector.load %arg5[%c0_57, %c0_58] : memref<128x128xbf16, #tpu.memory_space<vmem>>, vector<128x128xbf16>
    %cst_59 = arith.constant dense<0.000000e+00> : vector<2x128xf32>
    %77 = tpu.matmul %75, %76, %cst_59 {dimension_numbers = #tpu.dot_dimension_numbers<[1], [0], [0], [1], [0, 0, 1, 1], [], []>} : vector<2x128xbf16>, vector<128x128xbf16>, vector<2x128xf32> -> vector<2x128xf32>
    %c0_60 = arith.constant 0 : index
    %c0_61 = arith.constant 0 : index
    %78 = vector.load %arg6[%c0_60, %c0_61] : memref<1x128xf32, #tpu.memory_space<vmem>>, vector<1x128xf32>
    %79 = vector.broadcast %78 : vector<1x128xf32> to vector<2x128xf32>
    %80 = arith.addf %77, %79 : vector<2x128xf32>
    %cst_62 = arith.constant dense<0xFF800000> : vector<2xf32>
    %81 = vector.multi_reduction <maximumf>, %80, %cst_62 [1] : vector<2x128xf32> to vector<2xf32>
    %82 = vector.shape_cast %81 : vector<2xf32> to vector<2x1xf32>
    %83 = vector.broadcast %82 : vector<2x1xf32> to vector<2x128xf32>
    %84 = arith.subf %80, %83 : vector<2x128xf32>
    %85 = math.exp %84 : vector<2x128xf32>
    %cst_63 = arith.constant dense<0.000000e+00> : vector<2xf32>
    %86 = vector.multi_reduction <add>, %85, %cst_63 [1] : vector<2x128xf32> to vector<2xf32>
    %87 = vector.shape_cast %86 : vector<2xf32> to vector<2x1xf32>
    %88 = vector.broadcast %87 : vector<2x1xf32> to vector<2x128xf32>
    %89 = arith.divf %85, %88 : vector<2x128xf32>
    %c0_64 = arith.constant 0 : index
    %c0_65 = arith.constant 0 : index
    %90 = vector.load %arg7[%c0_64, %c0_65] : memref<2x128xf32, #tpu.memory_space<vmem>>, vector<2x128xf32>
    tpu.vector_store %arg7[%c0_64, %c0_65], %89 {strides = array<i32>} : memref<2x128xf32, #tpu.memory_space<vmem>>, vector<2x128xf32>,
    return
  }
}

</mosaic_0001>

<llo_original>
// kernel: _lambda_.1
$region0: #{_lambda_.1}
  #allocation0 [shape = 'u32[]', space=smem, size = 0x4, offset = 0x4, fixed_abs, tag = 'smem constant byte address 0x4 - core index']
  #allocation1 [shape = 'u32[144,128]{1,0:T(1,128)}', space=vmem, size = 0x12000, scoped, tag = 'internal scratch']
  %s0 = inlined_call_operand.vmem [shape: f32[2,18,128], index: 0, kind: input, shape index: {}]
  %s1 = inlined_call_operand.hbm [shape: bf16[384,128], index: 1, kind: input, shape index: {}]
  %s2 = inlined_call_operand.vmem [shape: f32[1,128], index: 2, kind: input, shape index: {}]
  %s3 = inlined_call_operand.hbm [shape: bf16[6,128,128], index: 3, kind: input, shape index: {}]
  %s4 = inlined_call_operand.vmem [shape: f32[6,1,128], index: 4, kind: input, shape index: {}]
  %s5 = inlined_call_operand.vmem [shape: bf16[128,128], index: 5, kind: input, shape index: {}]
  %s6 = inlined_call_operand.vmem [shape: f32[1,128], index: 6, kind: input, shape index: {}]
  %s7 = inlined_call_operand.hbm [shape: f32[2,128], index: 7, kind: output, shape index: {}]
  %s8 = sld [smem:[#allocation0]]
  $region46: #{_lambda_.1} parent=0
    _
  %s10 = ssub.s32 1, %s8
  %s11 = scalar_select 0, %s10, %s8
  $region1: #{_lambda_.1} parent=0
    #allocation2 [shape = 'u8[98304]{0}', space=vmem, size = 0x18000, scoped, tag = 'input window, operand 1, single buffered']
    #allocation3 [shape = 's32[1]{0}', space=sflag, size = 0x4, scoped, tag = 'scoped memory for _lambda_.1']
    #allocation4 [shape = 's32[1]{0}', space=sflag, size = 0x4, scoped, tag = 'scoped memory for _lambda_.1']
    #allocation5 [shape = 'u8[196608]{0}', space=vmem, size = 0x30000, scoped, tag = 'input window, operand 3, single buffered']
    #allocation6 [shape = 's32[1]{0}', space=sflag, size = 0x4, scoped, tag = 'scoped memory for _lambda_.1']
    #allocation7 [shape = 'u8[1024]{0}', space=vmem, size = 0x400, scoped, tag = 'output window, operand 0, single buffered']
    %12 = vsyncpa [#allocation3], 0
    %13 = vsyncpa [#allocation6], 0
    %14 = vsyncpa [#allocation4], 0
    // Predicated region
    $region2: #{_lambda_.1} parent=1 // pred_check
      _
    $region3: #{_lambda_.1} parent=1 // pred_check_branch
      %16 = sbr.rel (0) target = $region5
    $region4: #{_lambda_.1} parent=1 // pred_region
      _
    $region5: #{_lambda_.1} parent=1 // pred_fallthru
      _
    // Predicated region
    $region6: #{_lambda_.1} parent=1 // pred_check
      _
    $region7: #{_lambda_.1} parent=1 // pred_check_branch
      %18 = sbr.rel (0) target = $region9
    $region8: #{_lambda_.1} parent=1 // pred_region
      %s20 = ssub.s32 3072, 3072
      %21 = vsyncadd [#allocation3], %s20
      %s22 = sshll.u32 [#allocation2], 4
      %s23 = int_to_ptr.vmem [resolvable:$true] %s22
      %28 = dma.hbm_to_vmem [thread:$0]  %s1, 3072, %s23, [#allocation3], 64, 64, 4
    $region9: #{_lambda_.1} parent=1 // pred_fallthru
      _
    // Predicated region
    $region10: #{_lambda_.1} parent=1 // pred_check
      _
    $region11: #{_lambda_.1} parent=1 // pred_check_branch
      %30 = sbr.rel (0) target = $region13
    $region12: #{_lambda_.1} parent=1 // pred_region
      _
    $region13: #{_lambda_.1} parent=1 // pred_fallthru
      _
    // Predicated region
    $region14: #{_lambda_.1} parent=1 // pred_check
      _
    $region15: #{_lambda_.1} parent=1 // pred_check_branch
      %32 = sbr.rel (0) target = $region17
    $region16: #{_lambda_.1} parent=1 // pred_region
      %s34 = ssub.s32 6144, 6144
      %35 = vsyncadd [#allocation6], %s34
      %s36 = sshll.u32 [#allocation5], 4
      %s37 = int_to_ptr.vmem [resolvable:$true] %s36
      %42 = dma.hbm_to_vmem [thread:$0]  %s3, 6144, %s37, [#allocation6], 64, 64, 4
    $region17: #{_lambda_.1} parent=1 // pred_fallthru
      _
    // Predicated region
    $region18: #{_lambda_.1} parent=1 // pred_check
      _
    $region19: #{_lambda_.1} parent=1 // pred_check_branch
      %44 = sbr.rel (0) target = $region21
    $region20: #{_lambda_.1} parent=1 // pred_region
      _
    $region21: #{_lambda_.1} parent=1 // pred_fallthru
      _
    // Predicated region
    $region22: #{_lambda_.1} parent=1 // pred_check
      _
    $region23: #{_lambda_.1} parent=1 // pred_check_branch
      %46 = sbr.rel (0) target = $region25
    $region24: #{_lambda_.1} parent=1 // pred_region
      _
    $region25: #{_lambda_.1} parent=1 // pred_fallthru
      _
    // Predicated region
    $region26: #{_lambda_.1} parent=1 // pred_check
      _
    $region27: #{_lambda_.1} parent=1 // pred_check_branch
      %48 = sbr.rel (0) target = $region29
    $region28: #{_lambda_.1} parent=1 // pred_region
      _
    $region29: #{_lambda_.1} parent=1 // pred_fallthru
      _
    // Predicated region
    $region30: #{_lambda_.1} parent=1 // pred_check
      _
    $region31: #{_lambda_.1} parent=1 // pred_check_branch
      %50 = sbr.rel (0) target = $region33
    $region32: #{_lambda_.1} parent=1 // pred_region
      %51 = dma.done [#allocation3], 3072
    $region33: #{_lambda_.1} parent=1 // pred_fallthru
      _
    // Predicated region
    $region34: #{_lambda_.1} parent=1 // pred_check
      _
    $region35: #{_lambda_.1} parent=1 // pred_check_branch
      %53 = sbr.rel (0) target = $region37
    $region36: #{_lambda_.1} parent=1 // pred_region
      %54 = dma.done [#allocation6], 6144
    $region37: #{_lambda_.1} parent=1 // pred_fallthru
      _
    %v56 = vld [vmem:[%s0] ss:$2 sm:$0xff]
    %s57 = scalar_lea.vmem %s0, 24
    %v58 = vld [vmem:[%s57] ss:$2 sm:$0xff]
    %s59 = scalar_lea.vmem %s0, 1
    %v60 = vld [vmem:[%s59] ss:$2 sm:$0xff]
    %s61 = scalar_lea.vmem %s0, 25
    %v62 = vld [vmem:[%s61] ss:$2 sm:$0xff]
    %s63 = scalar_lea.vmem %s0, 2
    %v64 = vld [vmem:[%s63] ss:$2 sm:$0xff]
    %s65 = scalar_lea.vmem %s0, 26
    %v66 = vld [vmem:[%s65] ss:$2 sm:$0xff]
    %v67 = vpack.c.bf16 %v58, %v56
    %v68 = vpack.c.bf16 %v62, %v60
    %v69 = vpack.c.bf16 %v66, %v64
    %v70 = vld [vmem:[#allocation2] sm:$0xf]
    %v71 = vld [vmem:[#allocation2 + $0x4] sm:$0xf]
    %v72 = vld [vmem:[#allocation2 + $0x8] sm:$0xf]
    %v73 = vld [vmem:[#allocation2 + $0xc] sm:$0xf]
    %v74 = vld [vmem:[#allocation2 + $0x10] sm:$0xf]
    %v75 = vld [vmem:[#allocation2 + $0x14] sm:$0xf]
    %v76 = vld [vmem:[#allocation2 + $0x18] sm:$0xf]
    %v77 = vld [vmem:[#allocation2 + $0x1c] sm:$0xf]
    %v78 = vld [vmem:[#allocation2 + $0x20] sm:$0xf]
    %v79 = vld [vmem:[#allocation2 + $0x24] sm:$0xf]
    %v80 = vld [vmem:[#allocation2 + $0x28] sm:$0xf]
    %v81 = vld [vmem:[#allocation2 + $0x2c] sm:$0xf]
    %v82 = vld [vmem:[#allocation2 + $0x30] sm:$0xf]
    %v83 = vld [vmem:[#allocation2 + $0x34] sm:$0xf]
    %v84 = vld [vmem:[#allocation2 + $0x38] sm:$0xf]
    %v85 = vld [vmem:[#allocation2 + $0x3c] sm:$0xf]
    %v86 = vld [vmem:[#allocation2 + $0x40] sm:$0xf]
    %v87 = vld [vmem:[#allocation2 + $0x44] sm:$0xf]
    %v88 = vld [vmem:[#allocation2 + $0x48] sm:$0xf]
    %v89 = vld [vmem:[#allocation2 + $0x4c] sm:$0xf]
    %v90 = vld [vmem:[#allocation2 + $0x50] sm:$0xf]
    %v91 = vld [vmem:[#allocation2 + $0x54] sm:$0xf]
    %v92 = vld [vmem:[#allocation2 + $0x58] sm:$0xf]
    %v93 = vld [vmem:[#allocation2 + $0x5c] sm:$0xf]
    %v94 = vld [vmem:[#allocation2 + $0x60] sm:$0xf]
    %v95 = vld [vmem:[#allocation2 + $0x64] sm:$0xf]
    %v96 = vld [vmem:[#allocation2 + $0x68] sm:$0xf]
    %v97 = vld [vmem:[#allocation2 + $0x6c] sm:$0xf]
    %v98 = vld [vmem:[#allocation2 + $0x70] sm:$0xf]
    %v99 = vld [vmem:[#allocation2 + $0x74] sm:$0xf]
    %v100 = vld [vmem:[#allocation2 + $0x78] sm:$0xf]
    %v101 = vld [vmem:[#allocation2 + $0x7c] sm:$0xf]
    %v102 = vld [vmem:[#allocation2 + $0x80] sm:$0xf]
    %v103 = vld [vmem:[#allocation2 + $0x84] sm:$0xf]
    %v104 = vld [vmem:[#allocation2 + $0x88] sm:$0xf]
    %v105 = vld [vmem:[#allocation2 + $0x8c] sm:$0xf]
    %v106 = vld [vmem:[#allocation2 + $0x90] sm:$0xf]
    %v107 = vld [vmem:[#allocation2 + $0x94] sm:$0xf]
    %v108 = vld [vmem:[#allocation2 + $0x98] sm:$0xf]
    %v109 = vld [vmem:[#allocation2 + $0x9c] sm:$0xf]
    %v110 = vld [vmem:[#allocation2 + $0xa0] sm:$0xf]
    %v111 = vld [vmem:[#allocation2 + $0xa4] sm:$0xf]
    %v112 = vld [vmem:[#allocation2 + $0xa8] sm:$0xf]
    %v113 = vld [vmem:[#allocation2 + $0xac] sm:$0xf]
    %v114 = vld [vmem:[#allocation2 + $0xb0] sm:$0xf]
    %v115 = vld [vmem:[#allocation2 + $0xb4] sm:$0xf]
    %v116 = vld [vmem:[#allocation2 + $0xb8] sm:$0xf]
    %v117 = vld [vmem:[#allocation2 + $0xbc] sm:$0xf]
    %v166 = vunpack.c.l.b16 %v70
    %v167 = vunpack.c.l.b16 %v71
    %v168 = vunpack.c.l.b16 %v72
    %v169 = vunpack.c.l.b16 %v73
    %v170 = vunpack.c.l.b16 %v74
    %v171 = vunpack.c.l.b16 %v75
    %v172 = vunpack.c.l.b16 %v76
    %v173 = vunpack.c.l.b16 %v77
    %v174 = vunpack.c.l.b16 %v78
    %v175 = vunpack.c.l.b16 %v79
    %v176 = vunpack.c.l.b16 %v80
    %v177 = vunpack.c.l.b16 %v81
    %v178 = vunpack.c.l.b16 %v82
    %v179 = vunpack.c.l.b16 %v83
    %v180 = vunpack.c.l.b16 %v84
    %v181 = vunpack.c.l.b16 %v85
    %v182 = vunpack.c.l.b16 %v86
    %v183 = vunpack.c.l.b16 %v87
    %v184 = vunpack.c.l.b16 %v88
    %v185 = vunpack.c.l.b16 %v89
    %v186 = vunpack.c.l.b16 %v90
    %v187 = vunpack.c.l.b16 %v91
    %v188 = vunpack.c.l.b16 %v92
    %v189 = vunpack.c.l.b16 %v93
    %v190 = vunpack.c.l.b16 %v94
    %v191 = vunpack.c.l.b16 %v95
    %v192 = vunpack.c.l.b16 %v96
    %v193 = vunpack.c.l.b16 %v97
    %v194 = vunpack.c.l.b16 %v98
    %v195 = vunpack.c.l.b16 %v99
    %v196 = vunpack.c.l.b16 %v100
    %v197 = vunpack.c.l.b16 %v101
    %v198 = vunpack.c.l.b16 %v102
    %v199 = vunpack.c.l.b16 %v103
    %v200 = vunpack.c.l.b16 %v104
    %v201 = vunpack.c.l.b16 %v105
    %v202 = vunpack.c.l.b16 %v106
    %v203 = vunpack.c.l.b16 %v107
    %v204 = vunpack.c.l.b16 %v108
    %v205 = vunpack.c.l.b16 %v109
    %v206 = vunpack.c.l.b16 %v110
    %v207 = vunpack.c.l.b16 %v111
    %v208 = vunpack.c.l.b16 %v112
    %v209 = vunpack.c.l.b16 %v113
    %v210 = vunpack.c.l.b16 %v114
    %v211 = vunpack.c.l.b16 %v115
    %v212 = vunpack.c.l.b16 %v116
    %v213 = vunpack.c.l.b16 %v117
    %v214 = vpack.c.b16 %v167, %v166
    %v215 = vpack.c.b16 %v169, %v168
    %v216 = vpack.c.b16 %v171, %v170
    %v217 = vpack.c.b16 %v173, %v172
    %v218 = vpack.c.b16 %v175, %v174
    %v219 = vpack.c.b16 %v177, %v176
    %v220 = vpack.c.b16 %v179, %v178
    %v221 = vpack.c.b16 %v181, %v180
    %v222 = vpack.c.b16 %v183, %v182
    %v223 = vpack.c.b16 %v185, %v184
    %v224 = vpack.c.b16 %v187, %v186
    %v225 = vpack.c.b16 %v189, %v188
    %v226 = vpack.c.b16 %v191, %v190
    %v227 = vpack.c.b16 %v193, %v192
    %v228 = vpack.c.b16 %v195, %v194
    %v229 = vpack.c.b16 %v197, %v196
    %v230 = vpack.c.b16 %v199, %v198
    %v231 = vpack.c.b16 %v201, %v200
    %v232 = vpack.c.b16 %v203, %v202
    %v233 = vpack.c.b16 %v205, %v204
    %v234 = vpack.c.b16 %v207, %v206
    %v235 = vpack.c.b16 %v209, %v208
    %v236 = vpack.c.b16 %v211, %v210
    %v237 = vpack.c.b16 %v213, %v212
    %262 = vmatprep.subr.bf16.mxu0 0
    %263 = vmatpush1.bf16.msra.mxu0 %v214
    %264 = vmatprep.subr.bf16.mxu0 0
    %265 = vmatpush1.bf16.msra.mxu0 %v215
    %266 = vmatprep.subr.bf16.mxu0 0
    %267 = vmatpush1.bf16.msra.mxu0 %v216
    %268 = vmatprep.subr.bf16.mxu0 0
    %269 = vmatpush1.bf16.msra.mxu0 %v217
    %270 = vmatprep.subr.bf16.mxu0 0
    %271 = vmatpush1.bf16.msra.mxu0 %v218
    %272 = vmatprep.subr.bf16.mxu0 0
    %273 = vmatpush1.bf16.msra.mxu0 %v219
    %274 = vmatprep.subr.bf16.mxu0 0
    %275 = vmatpush1.bf16.msra.mxu0 %v220
    %276 = vmatprep.subr.bf16.mxu0 0
    %277 = vmatpush1.bf16.msra.mxu0 %v221
    %278 = vmatprep.subr.bf16.mxu0 0
    %279 = vmatpush1.bf16.msra.mxu0 %v222
    %280 = vmatprep.subr.bf16.mxu0 0
    %281 = vmatpush1.bf16.msra.mxu0 %v223
    %282 = vmatprep.subr.bf16.mxu0 0
    %283 = vmatpush1.bf16.msra.mxu0 %v224
    %284 = vmatprep.subr.bf16.mxu0 0
    %285 = vmatpush1.bf16.msra.mxu0 %v225
    %286 = vmatprep.subr.bf16.mxu0 0
    %287 = vmatpush1.bf16.msra.mxu0 %v226
    %288 = vmatprep.subr.bf16.mxu0 0
    %289 = vmatpush1.bf16.msra.mxu0 %v227
    %290 = vmatprep.subr.bf16.mxu0 0
    %291 = vmatpush1.bf16.msra.mxu0 %v228
    %292 = vmatprep.subr.bf16.mxu0 0
    %293 = vmatpush1.bf16.msra.mxu0 %v229
    %294 = vmatprep.mubr.bf16.mxu0 %v68
    %295 = vmatmul.mubr.bf16.gmra.mrb[0].mxu0 %v67
    %v296 = vpop.f32.mrb[0].mxu0
    %v297 = vadd.f32 0.0, %v296
    %v298 = vpop.f32.mrb[0].mxu0
    %v299 = vpop.f32.mrb[0].mxu0
    %v300 = vadd.f32 0.0, %v299
    %v301 = vpop.f32.mrb[0].mxu0
    %302 = vdwg.mxu0
    %303 = vmatprep.subr.bf16.mxu0 0
    %304 = vmatpush1.bf16.msra.mxu0 %v230
    %305 = vmatprep.subr.bf16.mxu0 0
    %306 = vmatpush1.bf16.msra.mxu0 %v231
    %307 = vmatprep.subr.bf16.mxu0 0
    %308 = vmatpush1.bf16.msra.mxu0 %v232
    %309 = vmatprep.subr.bf16.mxu0 0
    %310 = vmatpush1.bf16.msra.mxu0 %v233
    %311 = vmatprep.subr.bf16.mxu0 0
    %312 = vmatpush1.bf16.msra.mxu0 %v234
    %313 = vmatprep.subr.bf16.mxu0 0
    %314 = vmatpush1.bf16.msra.mxu0 %v235
    %315 = vmatprep.subr.bf16.mxu0 0
    %316 = vmatpush1.bf16.msra.mxu0 %v236
    %317 = vmatprep.subr.bf16.mxu0 0
    %318 = vmatpush1.bf16.msra.mxu0 %v237
    %319 = vmatprep.subr.bf16.mxu0 0
    %320 = vmatpush1.bf16.msra.mxu0 0
    %321 = vmatprep.subr.bf16.mxu0 0
    %322 = vmatpush1.bf16.msra.mxu0 0
    %323 = vmatprep.subr.bf16.mxu0 0
    %324 = vmatpush1.bf16.msra.mxu0 0
    %325 = vmatprep.subr.bf16.mxu0 0
    %326 = vmatpush1.bf16.msra.mxu0 0
    %327 = vmatprep.subr.bf16.mxu0 0
    %328 = vmatpush1.bf16.msra.mxu0 0
    %329 = vmatprep.subr.bf16.mxu0 0
    %330 = vmatpush1.bf16.msra.mxu0 0
    %331 = vmatprep.subr.bf16.mxu0 0
    %332 = vmatpush1.bf16.msra.mxu0 0
    %333 = vmatprep.subr.bf16.mxu0 0
    %334 = vmatpush1.bf16.msra.mxu0 0
    %335 = vmatprep.mubr.bf16.mxu0 0
    %336 = vmatmul.mubr.bf16.gmra.mrb[0].mxu0 %v69
    %v337 = vpop.f32.mrb[0].mxu0
    %v338 = vadd.f32 %v297, %v337
    %v339 = vpop.f32.mrb[0].mxu0
    %v340 = vpop.f32.mrb[0].mxu0
    %v341 = vadd.f32 %v300, %v340
    %v342 = vpop.f32.mrb[0].mxu0
    %343 = vdwg.mxu0
    %v344 = vrot.slane %v338, 4
    %v345 = vmax.f32 %v338, %v344
    %v346 = vrot.slane %v345, 2
    %v347 = vmax.f32 %v345, %v346
    %v348 = vrot.slane %v347, 1
    %v349 = vmax.f32 %v347, %v348
    %v350 = vrot.slane %v341, 4
    %v351 = vmax.f32 %v341, %v350
    %v352 = vrot.slane %v351, 2
    %v353 = vmax.f32 %v351, %v352
    %v354 = vrot.slane %v353, 1
    %v355 = vmax.f32 %v353, %v354
    %v356 = vld [vmem:[%s2] sm:$0x1]
    %v358 = vlaneseq
    %v359 = vshrl.u32 %v358, 7
    %v360 = vsub.s32 0, %v359
    %v361 = vrot.slane %v356, %v360
    %v363 = vadd.f32 %v349, %v361
    %v364 = vadd.f32 %v355, %v361
    %v365 = vmax.f32 %v363, 0.0
    %v366 = vmax.f32 %v364, 0.0
    %v367 = vpack.c.bf16 %v365, %v365
    %v368 = vpack.c.bf16 %v366, %v366
    %v369 = vld [vmem:[#allocation5] sm:$0xf]
    %v370 = vld [vmem:[#allocation5 + $0x4] sm:$0xf]
    %v371 = vld [vmem:[#allocation5 + $0x8] sm:$0xf]
    %v372 = vld [vmem:[#allocation5 + $0xc] sm:$0xf]
    %v373 = vld [vmem:[#allocation5 + $0x10] sm:$0xf]
    %v374 = vld [vmem:[#allocation5 + $0x14] sm:$0xf]
    %v375 = vld [vmem:[#allocation5 + $0x18] sm:$0xf]
    %v376 = vld [vmem:[#allocation5 + $0x1c] sm:$0xf]
    %v377 = vld [vmem:[#allocation5 + $0x20] sm:$0xf]
    %v378 = vld [vmem:[#allocation5 + $0x24] sm:$0xf]
    %v379 = vld [vmem:[#allocation5 + $0x28] sm:$0xf]
    %v380 = vld [vmem:[#allocation5 + $0x2c] sm:$0xf]
    %v381 = vld [vmem:[#allocation5 + $0x30] sm:$0xf]
    %v382 = vld [vmem:[#allocation5 + $0x34] sm:$0xf]
    %v383 = vld [vmem:[#allocation5 + $0x38] sm:$0xf]
    %v384 = vld [vmem:[#allocation5 + $0x3c] sm:$0xf]
    %v385 = vld [vmem:[%s4] sm:$0x1]
    %v387 = vlaneseq
    %v388 = vshrl.u32 %v387, 7
    %v389 = vsub.s32 0, %v388
    %v390 = vrot.slane %v385, %v389
    %v394 = vunpack.c.l.b16 %v367
    %v395 = vunpack.c.l.b16 %v368
    %v396 = vrot.slane %v395, 7
    %vm397 = vcmask 1041409
    %v398 = vsel %vm397, %v396, %v394
    %v399 = vpack.c.b16 %v398, %v398
    %v417 = vunpack.c.l.b16 %v369
    %v418 = vunpack.c.l.b16 %v370
    %v419 = vunpack.c.l.b16 %v371
    %v420 = vunpack.c.l.b16 %v372
    %v421 = vunpack.c.l.b16 %v373
    %v422 = vunpack.c.l.b16 %v374
    %v423 = vunpack.c.l.b16 %v375
    %v424 = vunpack.c.l.b16 %v376
    %v425 = vunpack.c.l.b16 %v377
    %v426 = vunpack.c.l.b16 %v378
    %v427 = vunpack.c.l.b16 %v379
    %v428 = vunpack.c.l.b16 %v380
    %v429 = vunpack.c.l.b16 %v381
    %v430 = vunpack.c.l.b16 %v382
    %v431 = vunpack.c.l.b16 %v383
    %v432 = vunpack.c.l.b16 %v384
    %v433 = vpack.c.b16 %v418, %v417
    %v434 = vpack.c.b16 %v420, %v419
    %v435 = vpack.c.b16 %v422, %v421
    %v436 = vpack.c.b16 %v424, %v423
    %v437 = vpack.c.b16 %v426, %v425
    %v438 = vpack.c.b16 %v428, %v427
    %v439 = vpack.c.b16 %v430, %v429
    %v440 = vpack.c.b16 %v432, %v431
    %449 = vmatprep.subr.bf16.mxu0 0
    %450 = vmatpush1.bf16.msra.mxu0 %v433
    %451 = vmatprep.subr.bf16.mxu0 0
    %452 = vmatpush1.bf16.msra.mxu0 %v434
    %453 = vmatprep.subr.bf16.mxu0 0
    %454 = vmatpush1.bf16.msra.mxu0 %v435
    %455 = vmatprep.subr.bf16.mxu0 0
    %456 = vmatpush1.bf16.msra.mxu0 %v436
    %457 = vmatprep.subr.bf16.mxu0 0
    %458 = vmatpush1.bf16.msra.mxu0 %v437
    %459 = vmatprep.subr.bf16.mxu0 0
    %460 = vmatpush1.bf16.msra.mxu0 %v438
    %461 = vmatprep.subr.bf16.mxu0 0
    %462 = vmatpush1.bf16.msra.mxu0 %v439
    %463 = vmatprep.subr.bf16.mxu0 0
    %464 = vmatpush1.bf16.msra.mxu0 %v440
    %465 = vmatprep.subr.bf16.mxu0 0
    %466 = vmatpush1.bf16.msra.mxu0 0
    %467 = vmatprep.subr.bf16.mxu0 0
    %468 = vmatpush1.bf16.msra.mxu0 0
    %469 = vmatprep.subr.bf16.mxu0 0
    %470 = vmatpush1.bf16.msra.mxu0 0
    %471 = vmatprep.subr.bf16.mxu0 0
    %472 = vmatpush1.bf16.msra.mxu0 0
    %473 = vmatprep.subr.bf16.mxu0 0
    %474 = vmatpush1.bf16.msra.mxu0 0
    %475 = vmatprep.subr.bf16.mxu0 0
    %476 = vmatpush1.bf16.msra.mxu0 0
    %477 = vmatprep.subr.bf16.mxu0 0
    %478 = vmatpush1.bf16.msra.mxu0 0
    %479 = vmatprep.subr.bf16.mxu0 0
    %480 = vmatpush1.bf16.msra.mxu0 0
    %481 = vmatprep.mubr.bf16.mxu0 0
    %482 = vmatmul.mubr.bf16.gmra.mrb[0].mxu0 %v399
    %v483 = vpop.f32.mrb[0].mxu0
    %v484 = vadd.f32 %v390, %v483
    %v485 = vpop.f32.mrb[0].mxu0
    %v486 = vpop.f32.mrb[0].mxu0
    %v487 = vpop.f32.mrb[0].mxu0
    %488 = vdwg.mxu0
    %v489 = vmax.f32 %v484, 0.0
    %v490 = vpack.c.bf16 %v489, %v489
    %s491 = scalar_lea.vmem [#allocation5], 64
    %v492 = vld [vmem:[%s491] sm:$0xf]
    %v493 = vld [vmem:[%s491 + $0x4] sm:$0xf]
    %v494 = vld [vmem:[%s491 + $0x8] sm:$0xf]
    %v495 = vld [vmem:[%s491 + $0xc] sm:$0xf]
    %v496 = vld [vmem:[%s491 + $0x10] sm:$0xf]
    %v497 = vld [vmem:[%s491 + $0x14] sm:$0xf]
    %v498 = vld [vmem:[%s491 + $0x18] sm:$0xf]
    %v499 = vld [vmem:[%s491 + $0x1c] sm:$0xf]
    %v500 = vld [vmem:[%s491 + $0x20] sm:$0xf]
    %v501 = vld [vmem:[%s491 + $0x24] sm:$0xf]
    %v502 = vld [vmem:[%s491 + $0x28] sm:$0xf]
    %v503 = vld [vmem:[%s491 + $0x2c] sm:$0xf]
    %v504 = vld [vmem:[%s491 + $0x30] sm:$0xf]
    %v505 = vld [vmem:[%s491 + $0x34] sm:$0xf]
    %v506 = vld [vmem:[%s491 + $0x38] sm:$0xf]
    %v507 = vld [vmem:[%s491 + $0x3c] sm:$0xf]
    %s508 = scalar_lea.vmem %s4, 1
    %v509 = vld [vmem:[%s508] sm:$0x1]
    %v511 = vlaneseq
    %v512 = vshrl.u32 %v511, 7
    %v513 = vsub.s32 0, %v512
    %v514 = vrot.slane %v509, %v513
    %v532 = vunpack.c.l.b16 %v492
    %v533 = vunpack.c.l.b16 %v493
    %v534 = vunpack.c.l.b16 %v494
    %v535 = vunpack.c.l.b16 %v495
    %v536 = vunpack.c.l.b16 %v496
    %v537 = vunpack.c.l.b16 %v497
    %v538 = vunpack.c.l.b16 %v498
    %v539 = vunpack.c.l.b16 %v499
    %v540 = vunpack.c.l.b16 %v500
    %v541 = vunpack.c.l.b16 %v501
    %v542 = vunpack.c.l.b16 %v502
    %v543 = vunpack.c.l.b16 %v503
    %v544 = vunpack.c.l.b16 %v504
    %v545 = vunpack.c.l.b16 %v505
    %v546 = vunpack.c.l.b16 %v506
    %v547 = vunpack.c.l.b16 %v507
    %v548 = vpack.c.b16 %v533, %v532
    %v549 = vpack.c.b16 %v535, %v534
    %v550 = vpack.c.b16 %v537, %v536
    %v551 = vpack.c.b16 %v539, %v538
    %v552 = vpack.c.b16 %v541, %v540
    %v553 = vpack.c.b16 %v543, %v542
    %v554 = vpack.c.b16 %v545, %v544
    %v555 = vpack.c.b16 %v547, %v546
    %564 = vmatprep.subr.bf16.mxu0 0
    %565 = vmatpush1.bf16.msra.mxu0 %v548
    %566 = vmatprep.subr.bf16.mxu0 0
    %567 = vmatpush1.bf16.msra.mxu0 %v549
    %568 = vmatprep.subr.bf16.mxu0 0
    %569 = vmatpush1.bf16.msra.mxu0 %v550
    %570 = vmatprep.subr.bf16.mxu0 0
    %571 = vmatpush1.bf16.msra.mxu0 %v551
    %572 = vmatprep.subr.bf16.mxu0 0
    %573 = vmatpush1.bf16.msra.mxu0 %v552
    %574 = vmatprep.subr.bf16.mxu0 0
    %575 = vmatpush1.bf16.msra.mxu0 %v553
    %576 = vmatprep.subr.bf16.mxu0 0
    %577 = vmatpush1.bf16.msra.mxu0 %v554
    %578 = vmatprep.subr.bf16.mxu0 0
    %579 = vmatpush1.bf16.msra.mxu0 %v555
    %580 = vmatprep.subr.bf16.mxu0 0
    %581 = vmatpush1.bf16.msra.mxu0 0
    %582 = vmatprep.subr.bf16.mxu0 0
    %583 = vmatpush1.bf16.msra.mxu0 0
    %584 = vmatprep.subr.bf16.mxu0 0
    %585 = vmatpush1.bf16.msra.mxu0 0
    %586 = vmatprep.subr.bf16.mxu0 0
    %587 = vmatpush1.bf16.msra.mxu0 0
    %588 = vmatprep.subr.bf16.mxu0 0
    %589 = vmatpush1.bf16.msra.mxu0 0
    %590 = vmatprep.subr.bf16.mxu0 0
    %591 = vmatpush1.bf16.msra.mxu0 0
    %592 = vmatprep.subr.bf16.mxu0 0
    %593 = vmatpush1.bf16.msra.mxu0 0
    %594 = vmatprep.subr.bf16.mxu0 0
    %595 = vmatpush1.bf16.msra.mxu0 0
    %596 = vmatprep.mubr.bf16.mxu0 0
    %597 = vmatmul.mubr.bf16.gmra.mrb[0].mxu0 %v490
    %v598 = vpop.f32.mrb[0].mxu0
    %v599 = vadd.f32 %v514, %v598
    %v600 = vpop.f32.mrb[0].mxu0
    %v601 = vpop.f32.mrb[0].mxu0
    %v602 = vpop.f32.mrb[0].mxu0
    %603 = vdwg.mxu0
    %v604 = vmax.f32 %v599, 0.0
    %v605 = vpack.c.bf16 %v604, %v604
    %s606 = scalar_lea.vmem [#allocation5], 128
    %v607 = vld [vmem:[%s606] sm:$0xf]
    %v608 = vld [vmem:[%s606 + $0x4] sm:$0xf]
    %v609 = vld [vmem:[%s606 + $0x8] sm:$0xf]
    %v610 = vld [vmem:[%s606 + $0xc] sm:$0xf]
    %v611 = vld [vmem:[%s606 + $0x10] sm:$0xf]
    %v612 = vld [vmem:[%s606 + $0x14] sm:$0xf]
    %v613 = vld [vmem:[%s606 + $0x18] sm:$0xf]
    %v614 = vld [vmem:[%s606 + $0x1c] sm:$0xf]
    %v615 = vld [vmem:[%s606 + $0x20] sm:$0xf]
    %v616 = vld [vmem:[%s606 + $0x24] sm:$0xf]
    %v617 = vld [vmem:[%s606 + $0x28] sm:$0xf]
    %v618 = vld [vmem:[%s606 + $0x2c] sm:$0xf]
    %v619 = vld [vmem:[%s606 + $0x30] sm:$0xf]
    %v620 = vld [vmem:[%s606 + $0x34] sm:$0xf]
    %v621 = vld [vmem:[%s606 + $0x38] sm:$0xf]
    %v622 = vld [vmem:[%s606 + $0x3c] sm:$0xf]
    %s623 = scalar_lea.vmem %s4, 2
    %v624 = vld [vmem:[%s623] sm:$0x1]
    %v626 = vlaneseq
    %v627 = vshrl.u32 %v626, 7
    %v628 = vsub.s32 0, %v627
    %v629 = vrot.slane %v624, %v628
    %v647 = vunpack.c.l.b16 %v607
    %v648 = vunpack.c.l.b16 %v608
    %v649 = vunpack.c.l.b16 %v609
    %v650 = vunpack.c.l.b16 %v610
    %v651 = vunpack.c.l.b16 %v611
    %v652 = vunpack.c.l.b16 %v612
    %v653 = vunpack.c.l.b16 %v613
    %v654 = vunpack.c.l.b16 %v614
    %v655 = vunpack.c.l.b16 %v615
    %v656 = vunpack.c.l.b16 %v616
    %v657 = vunpack.c.l.b16 %v617
    %v658 = vunpack.c.l.b16 %v618
    %v659 = vunpack.c.l.b16 %v619
    %v660 = vunpack.c.l.b16 %v620
    %v661 = vunpack.c.l.b16 %v621
    %v662 = vunpack.c.l.b16 %v622
    %v663 = vpack.c.b16 %v648, %v647
    %v664 = vpack.c.b16 %v650, %v649
    %v665 = vpack.c.b16 %v652, %v651
    %v666 = vpack.c.b16 %v654, %v653
    %v667 = vpack.c.b16 %v656, %v655
    %v668 = vpack.c.b16 %v658, %v657
    %v669 = vpack.c.b16 %v660, %v659
    %v670 = vpack.c.b16 %v662, %v661
    %679 = vmatprep.subr.bf16.mxu0 0
    %680 = vmatpush1.bf16.msra.mxu0 %v663
    %681 = vmatprep.subr.bf16.mxu0 0
    %682 = vmatpush1.bf16.msra.mxu0 %v664
    %683 = vmatprep.subr.bf16.mxu0 0
    %684 = vmatpush1.bf16.msra.mxu0 %v665
    %685 = vmatprep.subr.bf16.mxu0 0
    %686 = vmatpush1.bf16.msra.mxu0 %v666
    %687 = vmatprep.subr.bf16.mxu0 0
    %688 = vmatpush1.bf16.msra.mxu0 %v667
    %689 = vmatprep.subr.bf16.mxu0 0
    %690 = vmatpush1.bf16.msra.mxu0 %v668
    %691 = vmatprep.subr.bf16.mxu0 0
    %692 = vmatpush1.bf16.msra.mxu0 %v669
    %693 = vmatprep.subr.bf16.mxu0 0
    %694 = vmatpush1.bf16.msra.mxu0 %v670
    %695 = vmatprep.subr.bf16.mxu0 0
    %696 = vmatpush1.bf16.msra.mxu0 0
    %697 = vmatprep.subr.bf16.mxu0 0
    %698 = vmatpush1.bf16.msra.mxu0 0
    %699 = vmatprep.subr.bf16.mxu0 0
    %700 = vmatpush1.bf16.msra.mxu0 0
    %701 = vmatprep.subr.bf16.mxu0 0
    %702 = vmatpush1.bf16.msra.mxu0 0
    %703 = vmatprep.subr.bf16.mxu0 0
    %704 = vmatpush1.bf16.msra.mxu0 0
    %705 = vmatprep.subr.bf16.mxu0 0
    %706 = vmatpush1.bf16.msra.mxu0 0
    %707 = vmatprep.subr.bf16.mxu0 0
    %708 = vmatpush1.bf16.msra.mxu0 0
    %709 = vmatprep.subr.bf16.mxu0 0
    %710 = vmatpush1.bf16.msra.mxu0 0
    %711 = vmatprep.mubr.bf16.mxu0 0
    %712 = vmatmul.mubr.bf16.gmra.mrb[0].mxu0 %v605
    %v713 = vpop.f32.mrb[0].mxu0
    %v714 = vadd.f32 %v629, %v713
    %v715 = vpop.f32.mrb[0].mxu0
    %v716 = vpop.f32.mrb[0].mxu0
    %v717 = vpop.f32.mrb[0].mxu0
    %718 = vdwg.mxu0
    %v719 = vmax.f32 %v714, 0.0
    %v720 = vpack.c.bf16 %v719, %v719
    %s721 = scalar_lea.vmem [#allocation5], 192
    %v722 = vld [vmem:[%s721] sm:$0xf]
    %v723 = vld [vmem:[%s721 + $0x4] sm:$0xf]
    %v724 = vld [vmem:[%s721 + $0x8] sm:$0xf]
    %v725 = vld [vmem:[%s721 + $0xc] sm:$0xf]
    %v726 = vld [vmem:[%s721 + $0x10] sm:$0xf]
    %v727 = vld [vmem:[%s721 + $0x14] sm:$0xf]
    %v728 = vld [vmem:[%s721 + $0x18] sm:$0xf]
    %v729 = vld [vmem:[%s721 + $0x1c] sm:$0xf]
    %v730 = vld [vmem:[%s721 + $0x20] sm:$0xf]
    %v731 = vld [vmem:[%s721 + $0x24] sm:$0xf]
    %v732 = vld [vmem:[%s721 + $0x28] sm:$0xf]
    %v733 = vld [vmem:[%s721 + $0x2c] sm:$0xf]
    %v734 = vld [vmem:[%s721 + $0x30] sm:$0xf]
    %v735 = vld [vmem:[%s721 + $0x34] sm:$0xf]
    %v736 = vld [vmem:[%s721 + $0x38] sm:$0xf]
    %v737 = vld [vmem:[%s721 + $0x3c] sm:$0xf]
    %s738 = scalar_lea.vmem %s4, 3
    %v739 = vld [vmem:[%s738] sm:$0x1]
    %v741 = vlaneseq
    %v742 = vshrl.u32 %v741, 7
    %v743 = vsub.s32 0, %v742
    %v744 = vrot.slane %v739, %v743
    %v762 = vunpack.c.l.b16 %v722
    %v763 = vunpack.c.l.b16 %v723
    %v764 = vunpack.c.l.b16 %v724
    %v765 = vunpack.c.l.b16 %v725
    %v766 = vunpack.c.l.b16 %v726
    %v767 = vunpack.c.l.b16 %v727
    %v768 = vunpack.c.l.b16 %v728
    %v769 = vunpack.c.l.b16 %v729
    %v770 = vunpack.c.l.b16 %v730
    %v771 = vunpack.c.l.b16 %v731
    %v772 = vunpack.c.l.b16 %v732
    %v773 = vunpack.c.l.b16 %v733
    %v774 = vunpack.c.l.b16 %v734
    %v775 = vunpack.c.l.b16 %v735
    %v776 = vunpack.c.l.b16 %v736
    %v777 = vunpack.c.l.b16 %v737
    %v778 = vpack.c.b16 %v763, %v762
    %v779 = vpack.c.b16 %v765, %v764
    %v780 = vpack.c.b16 %v767, %v766
    %v781 = vpack.c.b16 %v769, %v768
    %v782 = vpack.c.b16 %v771, %v770
    %v783 = vpack.c.b16 %v773, %v772
    %v784 = vpack.c.b16 %v775, %v774
    %v785 = vpack.c.b16 %v777, %v776
    %794 = vmatprep.subr.bf16.mxu0 0
    %795 = vmatpush1.bf16.msra.mxu0 %v778
    %796 = vmatprep.subr.bf16.mxu0 0
    %797 = vmatpush1.bf16.msra.mxu0 %v779
    %798 = vmatprep.subr.bf16.mxu0 0
    %799 = vmatpush1.bf16.msra.mxu0 %v780
    %800 = vmatprep.subr.bf16.mxu0 0
    %801 = vmatpush1.bf16.msra.mxu0 %v781
    %802 = vmatprep.subr.bf16.mxu0 0
    %803 = vmatpush1.bf16.msra.mxu0 %v782
    %804 = vmatprep.subr.bf16.mxu0 0
    %805 = vmatpush1.bf16.msra.mxu0 %v783
    %806 = vmatprep.subr.bf16.mxu0 0
    %807 = vmatpush1.bf16.msra.mxu0 %v784
    %808 = vmatprep.subr.bf16.mxu0 0
    %809 = vmatpush1.bf16.msra.mxu0 %v785
    %810 = vmatprep.subr.bf16.mxu0 0
    %811 = vmatpush1.bf16.msra.mxu0 0
    %812 = vmatprep.subr.bf16.mxu0 0
    %813 = vmatpush1.bf16.msra.mxu0 0
    %814 = vmatprep.subr.bf16.mxu0 0
    %815 = vmatpush1.bf16.msra.mxu0 0
    %816 = vmatprep.subr.bf16.mxu0 0
    %817 = vmatpush1.bf16.msra.mxu0 0
    %818 = vmatprep.subr.bf16.mxu0 0
    %819 = vmatpush1.bf16.msra.mxu0 0
    %820 = vmatprep.subr.bf16.mxu0 0
    %821 = vmatpush1.bf16.msra.mxu0 0
    %822 = vmatprep.subr.bf16.mxu0 0
    %823 = vmatpush1.bf16.msra.mxu0 0
    %824 = vmatprep.subr.bf16.mxu0 0
    %825 = vmatpush1.bf16.msra.mxu0 0
    %826 = vmatprep.mubr.bf16.mxu0 0
    %827 = vmatmul.mubr.bf16.gmra.mrb[0].mxu0 %v720
    %v828 = vpop.f32.mrb[0].mxu0
    %v829 = vadd.f32 %v744, %v828
    %v830 = vpop.f32.mrb[0].mxu0
    %v831 = vpop.f32.mrb[0].mxu0
    %v832 = vpop.f32.mrb[0].mxu0
    %833 = vdwg.mxu0
    %v834 = vmax.f32 %v829, 0.0
    %v835 = vpack.c.bf16 %v834, %v834
    %s836 = scalar_lea.vmem [#allocation5], 256
    %v837 = vld [vmem:[%s836] sm:$0xf]
    %v838 = vld [vmem:[%s836 + $0x4] sm:$0xf]
    %v839 = vld [vmem:[%s836 + $0x8] sm:$0xf]
    %v840 = vld [vmem:[%s836 + $0xc] sm:$0xf]
    %v841 = vld [vmem:[%s836 + $0x10] sm:$0xf]
    %v842 = vld [vmem:[%s836 + $0x14] sm:$0xf]
    %v843 = vld [vmem:[%s836 + $0x18] sm:$0xf]
    %v844 = vld [vmem:[%s836 + $0x1c] sm:$0xf]
    %v845 = vld [vmem:[%s836 + $0x20] sm:$0xf]
    %v846 = vld [vmem:[%s836 + $0x24] sm:$0xf]
    %v847 = vld [vmem:[%s836 + $0x28] sm:$0xf]
    %v848 = vld [vmem:[%s836 + $0x2c] sm:$0xf]
    %v849 = vld [vmem:[%s836 + $0x30] sm:$0xf]
    %v850 = vld [vmem:[%s836 + $0x34] sm:$0xf]
    %v851 = vld [vmem:[%s836 + $0x38] sm:$0xf]
    %v852 = vld [vmem:[%s836 + $0x3c] sm:$0xf]
    %s853 = scalar_lea.vmem %s4, 4
    %v854 = vld [vmem:[%s853] sm:$0x1]
    %v856 = vlaneseq
    %v857 = vshrl.u32 %v856, 7
    %v858 = vsub.s32 0, %v857
    %v859 = vrot.slane %v854, %v858
    %v877 = vunpack.c.l.b16 %v837
    %v878 = vunpack.c.l.b16 %v838
    %v879 = vunpack.c.l.b16 %v839
    %v880 = vunpack.c.l.b16 %v840
    %v881 = vunpack.c.l.b16 %v841
    %v882 = vunpack.c.l.b16 %v842
    %v883 = vunpack.c.l.b16 %v843
    %v884 = vunpack.c.l.b16 %v844
    %v885 = vunpack.c.l.b16 %v845
    %v886 = vunpack.c.l.b16 %v846
    %v887 = vunpack.c.l.b16 %v847
    %v888 = vunpack.c.l.b16 %v848
    %v889 = vunpack.c.l.b16 %v849
    %v890 = vunpack.c.l.b16 %v850
    %v891 = vunpack.c.l.b16 %v851
    %v892 = vunpack.c.l.b16 %v852
    %v893 = vpack.c.b16 %v878, %v877
    %v894 = vpack.c.b16 %v880, %v879
    %v895 = vpack.c.b16 %v882, %v881
    %v896 = vpack.c.b16 %v884, %v883
    %v897 = vpack.c.b16 %v886, %v885
    %v898 = vpack.c.b16 %v888, %v887
    %v899 = vpack.c.b16 %v890, %v889
    %v900 = vpack.c.b16 %v892, %v891
    %909 = vmatprep.subr.bf16.mxu0 0
    %910 = vmatpush1.bf16.msra.mxu0 %v893
    %911 = vmatprep.subr.bf16.mxu0 0
    %912 = vmatpush1.bf16.msra.mxu0 %v894
    %913 = vmatprep.subr.bf16.mxu0 0
    %914 = vmatpush1.bf16.msra.mxu0 %v895
    %915 = vmatprep.subr.bf16.mxu0 0
    %916 = vmatpush1.bf16.msra.mxu0 %v896
    %917 = vmatprep.subr.bf16.mxu0 0
    %918 = vmatpush1.bf16.msra.mxu0 %v897
    %919 = vmatprep.subr.bf16.mxu0 0
    %920 = vmatpush1.bf16.msra.mxu0 %v898
    %921 = vmatprep.subr.bf16.mxu0 0
    %922 = vmatpush1.bf16.msra.mxu0 %v899
    %923 = vmatprep.subr.bf16.mxu0 0
    %924 = vmatpush1.bf16.msra.mxu0 %v900
    %925 = vmatprep.subr.bf16.mxu0 0
    %926 = vmatpush1.bf16.msra.mxu0 0
    %927 = vmatprep.subr.bf16.mxu0 0
    %928 = vmatpush1.bf16.msra.mxu0 0
    %929 = vmatprep.subr.bf16.mxu0 0
    %930 = vmatpush1.bf16.msra.mxu0 0
    %931 = vmatprep.subr.bf16.mxu0 0
    %932 = vmatpush1.bf16.msra.mxu0 0
    %933 = vmatprep.subr.bf16.mxu0 0
    %934 = vmatpush1.bf16.msra.mxu0 0
    %935 = vmatprep.subr.bf16.mxu0 0
    %936 = vmatpush1.bf16.msra.mxu0 0
    %937 = vmatprep.subr.bf16.mxu0 0
    %938 = vmatpush1.bf16.msra.mxu0 0
    %939 = vmatprep.subr.bf16.mxu0 0
    %940 = vmatpush1.bf16.msra.mxu0 0
    %941 = vmatprep.mubr.bf16.mxu0 0
    %942 = vmatmul.mubr.bf16.gmra.mrb[0].mxu0 %v835
    %v943 = vpop.f32.mrb[0].mxu0
    %v944 = vadd.f32 %v859, %v943
    %v945 = vpop.f32.mrb[0].mxu0
    %v946 = vpop.f32.mrb[0].mxu0
    %v947 = vpop.f32.mrb[0].mxu0
    %948 = vdwg.mxu0
    %v949 = vmax.f32 %v944, 0.0
    %v950 = vpack.c.bf16 %v949, %v949
    %s951 = scalar_lea.vmem [#allocation5], 320
    %v952 = vld [vmem:[%s951] sm:$0xf]
    %v953 = vld [vmem:[%s951 + $0x4] sm:$0xf]
    %v954 = vld [vmem:[%s951 + $0x8] sm:$0xf]
    %v955 = vld [vmem:[%s951 + $0xc] sm:$0xf]
    %v956 = vld [vmem:[%s951 + $0x10] sm:$0xf]
    %v957 = vld [vmem:[%s951 + $0x14] sm:$0xf]
    %v958 = vld [vmem:[%s951 + $0x18] sm:$0xf]
    %v959 = vld [vmem:[%s951 + $0x1c] sm:$0xf]
    %v960 = vld [vmem:[%s951 + $0x20] sm:$0xf]
    %v961 = vld [vmem:[%s951 + $0x24] sm:$0xf]
    %v962 = vld [vmem:[%s951 + $0x28] sm:$0xf]
    %v963 = vld [vmem:[%s951 + $0x2c] sm:$0xf]
    %v964 = vld [vmem:[%s951 + $0x30] sm:$0xf]
    %v965 = vld [vmem:[%s951 + $0x34] sm:$0xf]
    %v966 = vld [vmem:[%s951 + $0x38] sm:$0xf]
    %v967 = vld [vmem:[%s951 + $0x3c] sm:$0xf]
    %s968 = scalar_lea.vmem %s4, 5
    %v969 = vld [vmem:[%s968] sm:$0x1]
    %v971 = vlaneseq
    %v972 = vshrl.u32 %v971, 7
    %v973 = vsub.s32 0, %v972
    %v974 = vrot.slane %v969, %v973
    %v992 = vunpack.c.l.b16 %v952
    %v993 = vunpack.c.l.b16 %v953
    %v994 = vunpack.c.l.b16 %v954
    %v995 = vunpack.c.l.b16 %v955
    %v996 = vunpack.c.l.b16 %v956
    %v997 = vunpack.c.l.b16 %v957
    %v998 = vunpack.c.l.b16 %v958
    %v999 = vunpack.c.l.b16 %v959
    %v1000 = vunpack.c.l.b16 %v960
    %v1001 = vunpack.c.l.b16 %v961
    %v1002 = vunpack.c.l.b16 %v962
    %v1003 = vunpack.c.l.b16 %v963
    %v1004 = vunpack.c.l.b16 %v964
    %v1005 = vunpack.c.l.b16 %v965
    %v1006 = vunpack.c.l.b16 %v966
    %v1007 = vunpack.c.l.b16 %v967
    %v1008 = vpack.c.b16 %v993, %v992
    %v1009 = vpack.c.b16 %v995, %v994
    %v1010 = vpack.c.b16 %v997, %v996
    %v1011 = vpack.c.b16 %v999, %v998
    %v1012 = vpack.c.b16 %v1001, %v1000
    %v1013 = vpack.c.b16 %v1003, %v1002
    %v1014 = vpack.c.b16 %v1005, %v1004
    %v1015 = vpack.c.b16 %v1007, %v1006
    %1024 = vmatprep.subr.bf16.mxu0 0
    %1025 = vmatpush1.bf16.msra.mxu0 %v1008
    %1026 = vmatprep.subr.bf16.mxu0 0
    %1027 = vmatpush1.bf16.msra.mxu0 %v1009
    %1028 = vmatprep.subr.bf16.mxu0 0
    %1029 = vmatpush1.bf16.msra.mxu0 %v1010
    %1030 = vmatprep.subr.bf16.mxu0 0
    %1031 = vmatpush1.bf16.msra.mxu0 %v1011
    %1032 = vmatprep.subr.bf16.mxu0 0
    %1033 = vmatpush1.bf16.msra.mxu0 %v1012
    %1034 = vmatprep.subr.bf16.mxu0 0
    %1035 = vmatpush1.bf16.msra.mxu0 %v1013
    %1036 = vmatprep.subr.bf16.mxu0 0
    %1037 = vmatpush1.bf16.msra.mxu0 %v1014
    %1038 = vmatprep.subr.bf16.mxu0 0
    %1039 = vmatpush1.bf16.msra.mxu0 %v1015
    %1040 = vmatprep.subr.bf16.mxu0 0
    %1041 = vmatpush1.bf16.msra.mxu0 0
    %1042 = vmatprep.subr.bf16.mxu0 0
    %1043 = vmatpush1.bf16.msra.mxu0 0
    %1044 = vmatprep.subr.bf16.mxu0 0
    %1045 = vmatpush1.bf16.msra.mxu0 0
    %1046 = vmatprep.subr.bf16.mxu0 0
    %1047 = vmatpush1.bf16.msra.mxu0 0
    %1048 = vmatprep.subr.bf16.mxu0 0
    %1049 = vmatpush1.bf16.msra.mxu0 0
    %1050 = vmatprep.subr.bf16.mxu0 0
    %1051 = vmatpush1.bf16.msra.mxu0 0
    %1052 = vmatprep.subr.bf16.mxu0 0
    %1053 = vmatpush1.bf16.msra.mxu0 0
    %1054 = vmatprep.subr.bf16.mxu0 0
    %1055 = vmatpush1.bf16.msra.mxu0 0
    %1056 = vmatprep.mubr.bf16.mxu0 0
    %1057 = vmatmul.mubr.bf16.gmra.mrb[0].mxu0 %v950
    %v1058 = vpop.f32.mrb[0].mxu0
    %v1059 = vadd.f32 %v974, %v1058
    %v1060 = vpop.f32.mrb[0].mxu0
    %v1061 = vpop.f32.mrb[0].mxu0
    %v1062 = vpop.f32.mrb[0].mxu0
    %1063 = vdwg.mxu0
    %v1064 = vmax.f32 %v1059, 0.0
    %v1065 = vpack.c.bf16 %v1064, %v1064
    %v1066 = vld [vmem:[%s5] sm:$0xf]
    %v1067 = vld [vmem:[%s5 + $0x4] sm:$0xf]
    %v1068 = vld [vmem:[%s5 + $0x8] sm:$0xf]
    %v1069 = vld [vmem:[%s5 + $0xc] sm:$0xf]
    %v1070 = vld [vmem:[%s5 + $0x10] sm:$0xf]
    %v1071 = vld [vmem:[%s5 + $0x14] sm:$0xf]
    %v1072 = vld [vmem:[%s5 + $0x18] sm:$0xf]
    %v1073 = vld [vmem:[%s5 + $0x1c] sm:$0xf]
    %v1074 = vld [vmem:[%s5 + $0x20] sm:$0xf]
    %v1075 = vld [vmem:[%s5 + $0x24] sm:$0xf]
    %v1076 = vld [vmem:[%s5 + $0x28] sm:$0xf]
    %v1077 = vld [vmem:[%s5 + $0x2c] sm:$0xf]
    %v1078 = vld [vmem:[%s5 + $0x30] sm:$0xf]
    %v1079 = vld [vmem:[%s5 + $0x34] sm:$0xf]
    %v1080 = vld [vmem:[%s5 + $0x38] sm:$0xf]
    %v1081 = vld [vmem:[%s5 + $0x3c] sm:$0xf]
    %v1082 = vld [vmem:[%s6] sm:$0x1]
    %v1084 = vlaneseq
    %v1085 = vshrl.u32 %v1084, 7
    %v1086 = vsub.s32 0, %v1085
    %v1087 = vrot.slane %v1082, %v1086
    %v1105 = vunpack.c.l.b16 %v1066
    %v1106 = vunpack.c.l.b16 %v1067
    %v1107 = vunpack.c.l.b16 %v1068
    %v1108 = vunpack.c.l.b16 %v1069
    %v1109 = vunpack.c.l.b16 %v1070
    %v1110 = vunpack.c.l.b16 %v1071
    %v1111 = vunpack.c.l.b16 %v1072
    %v1112 = vunpack.c.l.b16 %v1073
    %v1113 = vunpack.c.l.b16 %v1074
    %v1114 = vunpack.c.l.b16 %v1075
    %v1115 = vunpack.c.l.b16 %v1076
    %v1116 = vunpack.c.l.b16 %v1077
    %v1117 = vunpack.c.l.b16 %v1078
    %v1118 = vunpack.c.l.b16 %v1079
    %v1119 = vunpack.c.l.b16 %v1080
    %v1120 = vunpack.c.l.b16 %v1081
    %v1121 = vpack.c.b16 %v1106, %v1105
    %v1122 = vpack.c.b16 %v1108, %v1107
    %v1123 = vpack.c.b16 %v1110, %v1109
    %v1124 = vpack.c.b16 %v1112, %v1111
    %v1125 = vpack.c.b16 %v1114, %v1113
    %v1126 = vpack.c.b16 %v1116, %v1115
    %v1127 = vpack.c.b16 %v1118, %v1117
    %v1128 = vpack.c.b16 %v1120, %v1119
    %1137 = vmatprep.subr.bf16.mxu0 0
    %1138 = vmatpush1.bf16.msra.mxu0 %v1121
    %1139 = vmatprep.subr.bf16.mxu0 0
    %1140 = vmatpush1.bf16.msra.mxu0 %v1122
    %1141 = vmatprep.subr.bf16.mxu0 0
    %1142 = vmatpush1.bf16.msra.mxu0 %v1123
    %1143 = vmatprep.subr.bf16.mxu0 0
    %1144 = vmatpush1.bf16.msra.mxu0 %v1124
    %1145 = vmatprep.subr.bf16.mxu0 0
    %1146 = vmatpush1.bf16.msra.mxu0 %v1125
    %1147 = vmatprep.subr.bf16.mxu0 0
    %1148 = vmatpush1.bf16.msra.mxu0 %v1126
    %1149 = vmatprep.subr.bf16.mxu0 0
    %1150 = vmatpush1.bf16.msra.mxu0 %v1127
    %1151 = vmatprep.subr.bf16.mxu0 0
    %1152 = vmatpush1.bf16.msra.mxu0 %v1128
    %1153 = vmatprep.subr.bf16.mxu0 0
    %1154 = vmatpush1.bf16.msra.mxu0 0
    %1155 = vmatprep.subr.bf16.mxu0 0
    %1156 = vmatpush1.bf16.msra.mxu0 0
    %1157 = vmatprep.subr.bf16.mxu0 0
    %1158 = vmatpush1.bf16.msra.mxu0 0
    %1159 = vmatprep.subr.bf16.mxu0 0
    %1160 = vmatpush1.bf16.msra.mxu0 0
    %1161 = vmatprep.subr.bf16.mxu0 0
    %1162 = vmatpush1.bf16.msra.mxu0 0
    %1163 = vmatprep.subr.bf16.mxu0 0
    %1164 = vmatpush1.bf16.msra.mxu0 0
    %1165 = vmatprep.subr.bf16.mxu0 0
    %1166 = vmatpush1.bf16.msra.mxu0 0
    %1167 = vmatprep.subr.bf16.mxu0 0
    %1168 = vmatpush1.bf16.msra.mxu0 0
    %1169 = vmatprep.mubr.bf16.mxu0 0
    %1170 = vmatmul.mubr.bf16.gmra.mrb[0].mxu0 %v1065
    %v1171 = vpop.f32.mrb[0].mxu0
    %v1172 = vadd.f32 %v1087, %v1171
    %v1173 = vpop.f32.mrb[0].mxu0
    %v1174 = vpop.f32.mrb[0].mxu0
    %v1175 = vpop.f32.mrb[0].mxu0
    %1176 = vdwg.mxu0
    %vm1177 = vcmask 1041408
    %v1178 = vsel %vm1177, %v1172, -inf
    %1179 = vmax.xlane.f32.xlu0 %v1178
    %v1180 = vpop.xlane.xlu0 %1179
    %v1181 = vsub.f32 %v1172, %v1180
    %v1182 = vmul.f32 %v1181, 1.442695
    %v1183 = vpow.pop %v1182
    %v1184 = vsel %vm1177, %v1183, 0.0
    %1185 = vadd.xlane.f32.xlu0 %v1184
    %v1186 = vpop.xlane.xlu0 %1185
    %v1187 = vrcp.pop %v1186
    %v1188 = vmul.f32 %v1183, %v1187
    %1189 = vst [vmem:[#allocation7] sm:$0x3] %v1188
    // Predicated region
    $region38: #{_lambda_.1} parent=1 // pred_check
      _
    $region39: #{_lambda_.1} parent=1 // pred_check_branch
      %1191 = sbr.rel (0) target = $region41
    $region40: #{_lambda_.1} parent=1 // pred_region
      %s1193 = ssub.s32 32, 32
      %1194 = vsyncadd [#allocation4], %s1193
      %s1196 = sshll.u32 [#allocation7], 4
      %s1197 = int_to_ptr.vmem [resolvable:$true] %s1196
      %1199 = dma.vmem_to_hbm [thread:$0]  %s1197, 32, %s7, [#allocation4]
    $region41: #{_lambda_.1} parent=1 // pred_fallthru
      _
    // Predicated region
    $region42: #{_lambda_.1} parent=1 // pred_check
      _
    $region43: #{_lambda_.1} parent=1 // pred_check_branch
      %1201 = sbr.rel (0) target = $region45
    $region44: #{_lambda_.1} parent=1 // pred_region
      %1202 = dma.done [#allocation4], 32
    $region45: #{_lambda_.1} parent=1 // pred_fallthru
      _
    %1203 = vsyncpa [#allocation3], 1
    %1204 = vsyncpa [#allocation6], 1
    %1205 = vsyncpa [#allocation4], 1

</llo_original>
